<compile_context>
chip_gen: v5e
topology: v5e:2x2
jax: 0.10.0
libtpu: 0.0.40
codegen_flags: <defaults>
</compile_context>

<pallas_src>
import jax
import jax.numpy as jnp
from jax.experimental import pallas as pl
from jax.experimental.pallas import tpu as pltpu

IN_FEATURES = 2
OUT_FEATURES = 2
LANES = 128
MAX_BLOCK_ROWS = 1024  # 1024 x 128 x 4 B = 512 KiB per block


def eltwise_kernel(x_ref, w1_ref, w2_ref, o_ref):
    # x_ref / o_ref: (block_rows, 128) f32 in VMEM -- flat view of the
    #   (row, feature) pairs, interleaved along lanes:
    #   even lane -> feature 0, odd lane -> feature 1 of the same row.
    # w1_ref / w2_ref: (2, 2) in SMEM, PyTorch layout [out_features, in_features].
    x = x_ref[...]

    # Partner element of each (x0, x1) pair.  128 is even, so every 128-lane
    # row holds 64 whole pairs and the circular-wrap values at lane 0 / 127
    # are never selected by the even/odd mask.
    x_next = pltpu.roll(x, shift=LANES - 1, axis=1)  # value of lane j+1 at lane j
    x_prev = pltpu.roll(x, shift=1, axis=1)          # value of lane j-1 at lane j

    lane = jax.lax.broadcasted_iota(jnp.int32, (1, LANES), 1)
    even = (lane & 1) == 0                            # (1, 128), broadcasts over rows
    partner = jnp.where(even, x_next, x_prev)

    x0 = jnp.where(even, x, partner)  # feature-0 value of this element's pair
    x1 = jnp.where(even, partner, x)  # feature-1 value of this element's pair

    # Linear (no bias): y = x @ W1.T, z = x @ W2.T, as VPU FMAs with SMEM scalars.
    w1_00 = w1_ref[0, 0]
    w1_01 = w1_ref[0, 1]
    w1_10 = w1_ref[1, 0]
    w1_11 = w1_ref[1, 1]
    w2_00 = w2_ref[0, 0]
    w2_01 = w2_ref[0, 1]
    w2_10 = w2_ref[1, 0]
    w2_11 = w2_ref[1, 1]

    y = jnp.where(even, w1_00 * x0 + w1_01 * x1, w1_10 * x0 + w1_11 * x1)
    z = jnp.where(even, w2_00 * x0 + w2_01 * x1, w2_10 * x0 + w2_11 * x1)

    # out = z + x * y  (x here is the element's own value: x0 at even lanes,
    # x1 at odd lanes, matching y/z computed for that output feature).
    o_ref[...] = (z + x * y).astype(o_ref.dtype)


def eltwise(x, w1, w2):
    """x: (..., 2); w1/w2: (2, 2) stored PyTorch-style as [out, in]."""
    orig_shape = x.shape
    assert orig_shape[-1] == IN_FEATURES

    x_flat = x.reshape(-1)           # interleaved (x0, x1) pairs; n is even
    n = x_flat.shape[0]              # = M * 2

    rows = pl.cdiv(n, LANES)
    block_rows = min(MAX_BLOCK_ROWS, ((rows + 7) // 8) * 8)  # multiple of 8
    padded_rows = pl.cdiv(rows, block_rows) * block_rows
    pad = padded_rows * LANES - n
    if pad:
        x_flat = jnp.pad(x_flat, (0, pad))
    x2 = x_flat.reshape(padded_rows, LANES)

    grid = (padded_rows // block_rows,)

    out = pl.pallas_call(
        eltwise_kernel,
        out_shape=jax.ShapeDtypeStruct((padded_rows, LANES), x.dtype),
        grid=grid,
        in_specs=[
            pl.BlockSpec((block_rows, LANES), lambda i: (i, 0)),
            pl.BlockSpec(memory_space=pltpu.MemorySpace.SMEM),
            pl.BlockSpec(memory_space=pltpu.MemorySpace.SMEM),
        ],
        out_specs=pl.BlockSpec((block_rows, LANES), lambda i: (i, 0)),
        compiler_params=pltpu.CompilerParams(
            dimension_semantics=("parallel",)),
    )(x2, w1, w2)

    out_flat = out.reshape(-1)
    if pad:
        out_flat = out_flat[:n]
    return out_flat.reshape(orig_shape[:-1] + (OUT_FEATURES,))


if __name__ == "__main__":
    key = jax.random.PRNGKey(0)
    kx, kw1, kw2 = jax.random.split(key, 3)

    # Small shape consistent with Linear(2, 2): batch=2, seq=8, features=2.
    x = jax.random.normal(kx, (2, 8, IN_FEATURES), dtype=jnp.float32)
    # nn.Linear stores weights as [out_features, in_features].
    w1 = jax.random.normal(kw1, (OUT_FEATURES, IN_FEATURES), dtype=jnp.float32)
    w2 = jax.random.normal(kw2, (OUT_FEATURES, IN_FEATURES), dtype=jnp.float32)

    out = eltwise(x, w1, w2)
    out = jax.block_until_ready(out)

    # Pure-JAX reference check.
    y_ref = x @ w1.T
    z_ref = x @ w2.T
    ref = z_ref + x * y_ref
    assert out.shape == ref.shape
    assert jnp.allclose(out, ref, atol=1e-5, rtol=1e-5)

    print("KERNEL_OK")
</pallas_src>

<mosaic_0001>
module attributes {stable_mosaic.version = 11 : i64} {
  func.func @eltwise_kernel(%arg0: i32, %arg1: memref<8x128xf32, #tpu.memory_space<vmem>>, %arg2: memref<2x2xf32, #tpu.memory_space<smem>>, %arg3: memref<2x2xf32, #tpu.memory_space<smem>>, %arg4: memref<8x128xf32, #tpu.memory_space<vmem>>) attributes {dimension_semantics = [#tpu.dimension_semantics<parallel>], iteration_bounds = array<i64: 1>, scalar_prefetch = 0 : i64, scratch_operands = 0 : i64, tpu.core_type = #tpu.core_type<tc>, window_params = [{transform_indices = @transform_0, window_bounds = array<i64: 8, 128>}, {transform_indices = @transform_1, window_bounds = array<i64: 2, 2>}, {transform_indices = @transform_2, window_bounds = array<i64: 2, 2>}, {transform_indices = @transform_3, window_bounds = array<i64: 8, 128>}]} {
    %c0 = arith.constant 0 : index
    %c0_0 = arith.constant 0 : index
    %0 = vector.load %arg1[%c0, %c0_0] : memref<8x128xf32, #tpu.memory_space<vmem>>, vector<8x128xf32>
    %c127_i32 = arith.constant 127 : i32
    %1 = tpu.dynamic_rotate %0 by %c127_i32 dim 1 : vector<8x128xf32>, i32 -> vector<8x128xf32>
    %c1_i32 = arith.constant 1 : i32
    %2 = tpu.dynamic_rotate %0 by %c1_i32 dim 1 : vector<8x128xf32>, i32 -> vector<8x128xf32>
    %3 = tpu.iota {dimensions = array<i32: 1>} : vector<1x128xi32>
    %c1_i32_1 = arith.constant 1 : i32
    %4 = vector.broadcast %c1_i32_1 : i32 to vector<1x128xi32>
    %5 = arith.andi %3, %4 : vector<1x128xi32>
    %c0_i32 = arith.constant 0 : i32
    %6 = vector.broadcast %c0_i32 : i32 to vector<1x128xi32>
    %7 = arith.cmpi eq, %5, %6 : vector<1x128xi32>
    %8 = vector.shape_cast %7 : vector<1x128xi1> to vector<1x128xi1>
    %9 = vector.broadcast %8 : vector<1x128xi1> to vector<8x128xi1>
    %10 = arith.select %9, %1, %2 : vector<8x128xi1>, vector<8x128xf32>
    %11 = vector.shape_cast %7 : vector<1x128xi1> to vector<1x128xi1>
    %12 = vector.broadcast %11 : vector<1x128xi1> to vector<8x128xi1>
    %13 = arith.select %12, %0, %10 : vector<8x128xi1>, vector<8x128xf32>
    %14 = vector.shape_cast %7 : vector<1x128xi1> to vector<1x128xi1>
    %15 = vector.broadcast %14 : vector<1x128xi1> to vector<8x128xi1>
    %16 = arith.select %15, %10, %0 : vector<8x128xi1>, vector<8x128xf32>
    %c0_2 = arith.constant 0 : index
    %c0_3 = arith.constant 0 : index
    %17 = memref.load %arg2[%c0_2, %c0_3] : memref<2x2xf32, #tpu.memory_space<smem>>
    %c0_4 = arith.constant 0 : index
    %c1 = arith.constant 1 : index
    %18 = memref.load %arg2[%c0_4, %c1] : memref<2x2xf32, #tpu.memory_space<smem>>
    %c1_5 = arith.constant 1 : index
    %c0_6 = arith.constant 0 : index
    %19 = memref.load %arg2[%c1_5, %c0_6] : memref<2x2xf32, #tpu.memory_space<smem>>
    %c1_7 = arith.constant 1 : index
    %c1_8 = arith.constant 1 : index
    %20 = memref.load %arg2[%c1_7, %c1_8] : memref<2x2xf32, #tpu.memory_space<smem>>
    %c0_9 = arith.constant 0 : index
    %c0_10 = arith.constant 0 : index
    %21 = memref.load %arg3[%c0_9, %c0_10] : memref<2x2xf32, #tpu.memory_space<smem>>
    %c0_11 = arith.constant 0 : index
    %c1_12 = arith.constant 1 : index
    %22 = memref.load %arg3[%c0_11, %c1_12] : memref<2x2xf32, #tpu.memory_space<smem>>
    %c1_13 = arith.constant 1 : index
    %c0_14 = arith.constant 0 : index
    %23 = memref.load %arg3[%c1_13, %c0_14] : memref<2x2xf32, #tpu.memory_space<smem>>
    %c1_15 = arith.constant 1 : index
    %c1_16 = arith.constant 1 : index
    %24 = memref.load %arg3[%c1_15, %c1_16] : memref<2x2xf32, #tpu.memory_space<smem>>
    %25 = vector.broadcast %17 : f32 to vector<8x128xf32>
    %26 = arith.mulf %25, %13 : vector<8x128xf32>
    %27 = vector.broadcast %18 : f32 to vector<8x128xf32>
    %28 = arith.mulf %27, %16 : vector<8x128xf32>
    %29 = arith.addf %26, %28 : vector<8x128xf32>
    %30 = vector.broadcast %19 : f32 to vector<8x128xf32>
    %31 = arith.mulf %30, %13 : vector<8x128xf32>
    %32 = vector.broadcast %20 : f32 to vector<8x128xf32>
    %33 = arith.mulf %32, %16 : vector<8x128xf32>
    %34 = arith.addf %31, %33 : vector<8x128xf32>
    %35 = vector.shape_cast %7 : vector<1x128xi1> to vector<1x128xi1>
    %36 = vector.broadcast %35 : vector<1x128xi1> to vector<8x128xi1>
    %37 = arith.select %36, %29, %34 : vector<8x128xi1>, vector<8x128xf32>
    %38 = vector.broadcast %21 : f32 to vector<8x128xf32>
    %39 = arith.mulf %38, %13 : vector<8x128xf32>
    %40 = vector.broadcast %22 : f32 to vector<8x128xf32>
    %41 = arith.mulf %40, %16 : vector<8x128xf32>
    %42 = arith.addf %39, %41 : vector<8x128xf32>
    %43 = vector.broadcast %23 : f32 to vector<8x128xf32>
    %44 = arith.mulf %43, %13 : vector<8x128xf32>
    %45 = vector.broadcast %24 : f32 to vector<8x128xf32>
    %46 = arith.mulf %45, %16 : vector<8x128xf32>
    %47 = arith.addf %44, %46 : vector<8x128xf32>
    %48 = vector.shape_cast %7 : vector<1x128xi1> to vector<1x128xi1>
    %49 = vector.broadcast %48 : vector<1x128xi1> to vector<8x128xi1>
    %50 = arith.select %49, %42, %47 : vector<8x128xi1>, vector<8x128xf32>
    %51 = arith.mulf %0, %37 : vector<8x128xf32>
    %52 = arith.addf %50, %51 : vector<8x128xf32>
    %c0_17 = arith.constant 0 : index
    %c0_18 = arith.constant 0 : index
    %53 = vector.load %arg4[%c0_17, %c0_18] : memref<8x128xf32, #tpu.memory_space<vmem>>, vector<8x128xf32>
    tpu.vector_store %arg4[%c0_17, %c0_18], %52 {strides = array<i32>} : memref<8x128xf32, #tpu.memory_space<vmem>>, vector<8x128xf32>,
    return
  }
  func.func @transform_0(%arg0: i32) -> (i32, i32) {
    %c0_i32 = arith.constant 0 : i32
    %c0_i32_0 = arith.constant 0 : i32
    return %arg0, %c0_i32 : i32, i32
  }
  func.func @transform_1(%arg0: i32) -> (i32, i32) {
    %c0_i32 = arith.constant 0 : i32
    %c0_i32_0 = arith.constant 0 : i32
    %c0_i32_1 = arith.constant 0 : i32
    return %c0_i32, %c0_i32_0 : i32, i32
  }
  func.func @transform_2(%arg0: i32) -> (i32, i32) {
    %c0_i32 = arith.constant 0 : i32
    %c0_i32_0 = arith.constant 0 : i32
    %c0_i32_1 = arith.constant 0 : i32
    return %c0_i32, %c0_i32_0 : i32, i32
  }
  func.func @transform_3(%arg0: i32) -> (i32, i32) {
    %c0_i32 = arith.constant 0 : i32
    %c0_i32_0 = arith.constant 0 : i32
    return %arg0, %c0_i32 : i32, i32
  }
}

</mosaic_0001>

<llo_original>
// kernel: tpu_custom_call.1
$region0: #{tpu_custom_call.1}
  #allocation0 [shape = 'u32[]', space=smem, size = 0x4, offset = 0x4, fixed_abs, tag = 'smem constant byte address 0x4 - core index']
  #allocation1 [shape = 'u32[72,128]{1,0:T(1,128)}', space=vmem, size = 0x9000, scoped, tag = 'internal scratch']
  %s0 = inlined_call_operand.hbm [shape: f32[8,128], index: 0, kind: input, shape index: {}]
  %s1 = inlined_call_operand.hbm [shape: f32[2,2], index: 1, kind: input, shape index: {}]
  %s2 = inlined_call_operand.hbm [shape: f32[2,2], index: 2, kind: input, shape index: {}]
  %s3 = inlined_call_operand.hbm [shape: f32[8,128], index: 3, kind: output, shape index: {}]
  %s4 = sld [smem:[#allocation0]]
  $region34: #{tpu_custom_call.1} parent=0
    _
  %s6 = ssub.s32 1, %s4
  %s7 = scalar_select 0, %s6, %s4
  $region1: #{tpu_custom_call.1} parent=0
    #allocation2 [shape = 'u8[4096]{0}', space=vmem, size = 0x1000, scoped, tag = 'input window, operand 0, single buffered']
    #allocation3 [shape = 's32[1]{0}', space=sflag, size = 0x4, scoped, tag = 'scoped memory for tpu_custom_call.1']
    #allocation4 [shape = 's32[1]{0}', space=sflag, size = 0x4, scoped, tag = 'scoped memory for tpu_custom_call.1']
    #allocation5 [shape = 's32[1]{0}', space=sflag, size = 0x4, scoped, tag = 'scoped memory for tpu_custom_call.1']
    #allocation6 [shape = 'u8[1024]{0}', space=smem, size = 0x400, scoped, tag = 'input window, operand 1, single buffered']
    #allocation7 [shape = 'u8[1024]{0}', space=smem, size = 0x400, scoped, tag = 'input window, operand 2, single buffered']
    #allocation8 [shape = 's32[1]{0}', space=sflag, size = 0x4, scoped, tag = 'scoped memory for tpu_custom_call.1']
    #allocation9 [shape = 'u8[4096]{0}', space=vmem, size = 0x1000, scoped, tag = 'output window, operand 0, single buffered']
    %8 = vsyncpa [#allocation3], 0
    %9 = vsyncpa [#allocation5], 0
    %10 = vsyncpa [#allocation8], 0
    %11 = vsyncpa [#allocation4], 0
    // Predicated region
    $region2: #{tpu_custom_call.1} parent=1 // pred_check
      _
    $region3: #{tpu_custom_call.1} parent=1 // pred_check_branch
      %13 = sbr.rel (0) target = $region5
    $region4: #{tpu_custom_call.1} parent=1 // pred_region
      %15 = vsyncadd [#allocation3], 0
      %s17 = sshll.u32 %s0, 4
      %s18 = int_to_ptr.hbm [resolvable:$true] %s17
      %s19 = sshll.u32 [#allocation2], 4
      %s20 = int_to_ptr.vmem [resolvable:$true] %s19
      %22 = dma.hbm_to_vmem [thread:$0]  %s18, 128, %s20, [#allocation3]
    $region5: #{tpu_custom_call.1} parent=1 // pred_fallthru
      _
    // Predicated region
    $region6: #{tpu_custom_call.1} parent=1 // pred_check
      _
    $region7: #{tpu_custom_call.1} parent=1 // pred_check_branch
      %24 = sbr.rel (0) target = $region9
    $region8: #{tpu_custom_call.1} parent=1 // pred_region
      %26 = vsyncadd [#allocation5], 0
      %s28 = sshll.u32 %s1, 4
      %s29 = int_to_ptr.hbm [resolvable:$true] %s28
      %31 = dma.hbm_to_smem %s29, 32, [#allocation6], [#allocation5]
    $region9: #{tpu_custom_call.1} parent=1 // pred_fallthru
      _
    // Predicated region
    $region10: #{tpu_custom_call.1} parent=1 // pred_check
      _
    $region11: #{tpu_custom_call.1} parent=1 // pred_check_branch
      %33 = sbr.rel (0) target = $region13
    $region12: #{tpu_custom_call.1} parent=1 // pred_region
      %35 = vsyncadd [#allocation8], 0
      %s37 = sshll.u32 %s2, 4
      %s38 = int_to_ptr.hbm [resolvable:$true] %s37
      %40 = dma.hbm_to_smem %s38, 32, [#allocation7], [#allocation8]
    $region13: #{tpu_custom_call.1} parent=1 // pred_fallthru
      _
    // Predicated region
    $region14: #{tpu_custom_call.1} parent=1 // pred_check
      _
    $region15: #{tpu_custom_call.1} parent=1 // pred_check_branch
      %42 = sbr.rel (0) target = $region17
    $region16: #{tpu_custom_call.1} parent=1 // pred_region
      %44 = dma.done [#allocation3], 128
    $region17: #{tpu_custom_call.1} parent=1 // pred_fallthru
      _
    // Predicated region
    $region18: #{tpu_custom_call.1} parent=1 // pred_check
      _
    $region19: #{tpu_custom_call.1} parent=1 // pred_check_branch
      %46 = sbr.rel (0) target = $region21
    $region20: #{tpu_custom_call.1} parent=1 // pred_region
      %48 = dma.done [#allocation5], 32
    $region21: #{tpu_custom_call.1} parent=1 // pred_fallthru
      _
    // Predicated region
    $region22: #{tpu_custom_call.1} parent=1 // pred_check
      _
    $region23: #{tpu_custom_call.1} parent=1 // pred_check_branch
      %50 = sbr.rel (0) target = $region25
    $region24: #{tpu_custom_call.1} parent=1 // pred_region
      %52 = dma.done [#allocation8], 32
    $region25: #{tpu_custom_call.1} parent=1 // pred_fallthru
      _
    %53 = sfence
    %v54 = vld [vmem:[#allocation2] sm:$0xff]
    %55 = vrot.lane.b32.xlu0 %v54, 127
    %v56 = vpop.permute.xlu0 %55
    %57 = vrot.lane.b32.xlu0 %v54, 1
    %v58 = vpop.permute.xlu0 %57
    %v59 = vlaneseq
    %v60 = vand.u32 %v59, 127
    %v61 = vand.u32 %v60, 1
    %vm62 = vcmp.eq.s32.totalorder %v61, 0
    %v63 = vsel %vm62, 1, 0
    %vm64 = vcmp.eq.s32.totalorder %v63, 1
    %v65 = vsel %vm64, %v54, %v58
    %v66 = vsel %vm64, %v56, %v54
    %s67 = sld [smem:[#allocation6]]
    %s68 = sld [smem:[#allocation6 + $0x1]]
    %s69 = sld [smem:[#allocation6 + $0x80]]
    %s70 = sld [smem:[#allocation6 + $0x81]]
    %s71 = sld [smem:[#allocation7]]
    %s72 = sld [smem:[#allocation7 + $0x1]]
    %s73 = sld [smem:[#allocation7 + $0x80]]
    %s74 = sld [smem:[#allocation7 + $0x81]]
    %v75 = vstv %s67
    %v76 = vmul.f32 %v75, %v65
    %v77 = vstv %s68
    %v78 = vmul.f32 %v77, %v66
    %v79 = vadd.f32 %v76, %v78
    %v80 = vstv %s69
    %v81 = vmul.f32 %v80, %v65
    %v82 = vstv %s70
    %v83 = vmul.f32 %v82, %v66
    %v84 = vadd.f32 %v81, %v83
    %v85 = vsel %vm64, %v79, %v84
    %v86 = vstv %s71
    %v87 = vmul.f32 %v86, %v65
    %v88 = vstv %s72
    %v89 = vmul.f32 %v88, %v66
    %v90 = vadd.f32 %v87, %v89
    %v91 = vstv %s73
    %v92 = vmul.f32 %v91, %v65
    %v93 = vstv %s74
    %v94 = vmul.f32 %v93, %v66
    %v95 = vadd.f32 %v92, %v94
    %v96 = vsel %vm64, %v90, %v95
    %v97 = vmul.f32 %v54, %v85
    %v98 = vadd.f32 %v96, %v97
    %99 = vst [vmem:[#allocation9] sm:$0xff] %v98
    // Predicated region
    $region26: #{tpu_custom_call.1} parent=1 // pred_check
      _
    $region27: #{tpu_custom_call.1} parent=1 // pred_check_branch
      %101 = sbr.rel (0) target = $region29
    $region28: #{tpu_custom_call.1} parent=1 // pred_region
      %103 = vsyncadd [#allocation4], 0
      %s105 = sshll.u32 [#allocation9], 4
      %s106 = int_to_ptr.vmem [resolvable:$true] %s105
      %s107 = sshll.u32 %s3, 4
      %s108 = int_to_ptr.hbm [resolvable:$true] %s107
      %110 = dma.vmem_to_hbm [thread:$0]  %s106, 128, %s108, [#allocation4]
    $region29: #{tpu_custom_call.1} parent=1 // pred_fallthru
      _
    // Predicated region
    $region30: #{tpu_custom_call.1} parent=1 // pred_check
      _
    $region31: #{tpu_custom_call.1} parent=1 // pred_check_branch
      %112 = sbr.rel (0) target = $region33
    $region32: #{tpu_custom_call.1} parent=1 // pred_region
      %114 = dma.done [#allocation4], 128
    $region33: #{tpu_custom_call.1} parent=1 // pred_fallthru
      _
    %115 = vsyncpa [#allocation3], 1
    %116 = vsyncpa [#allocation4], 1
    %117 = vsyncpa [#allocation5], 1
    %118 = vsyncpa [#allocation8], 1

</llo_original>
